<compile_context>
chip_gen: v5e
topology: v5e:2x2
jax: 0.10.0
libtpu: 0.0.40
codegen_flags: <defaults>
</compile_context>

<pallas_src>
import functools
import math

import jax
import jax.numpy as jnp
from jax import lax
from jax.experimental import pallas as pl
from jax.experimental.pallas import tpu as pltpu

# deterministic stand-in for training_config.loss_weight (synthetic, not a checkpoint)
LOSS_WEIGHT = {"l_single_bond_loss": 1.0}


def _partner(v, d, hi_mask):
    """Value of lane (j XOR d) delivered to lane j (d = power of two < group).

    pltpu.roll follows jnp.roll semantics (out[j] = in[(j - shift) % 128]), so
    roll(+d) delivers lane j-d (partner when bit d of j is set) and
    roll(128-d) delivers lane j+d (partner when bit d of j is clear).
    """
    return jnp.where(hi_mask,
                     pltpu.roll(v, shift=d, axis=1),
                     pltpu.roll(v, shift=128 - d, axis=1))


def _masked_ce_kernel(lab_ref, x_ref, out_ref, *, group, block_rows, n_blocks,
                      steps, use_mxu_sum):
    """One (core, step) grid point of the masked cross-entropy numerator.

    x_ref   : (block_rows, 128) logits, lane-dense.  Lane j of packed row t is
              class (j & (group-1)) of sample (t*spr + (j >> gbits)).
    lab_ref : (block_rows, 128 // group) int32 labels, -1 == not selected / pad.
    out_ref : (32, 128) f32 resident accumulator (per core) of CE partial sums.
    """
    spr = 128 // group
    gbits = group.bit_length() - 1
    c = pl.program_id(0)
    i = pl.program_id(1)

    @pl.when(i == 0)
    def _init():
        out_ref[...] = jnp.zeros_like(out_ref)

    # Skip overshoot steps entirely (their clamped DMA re-reads the last block
    # but no compute / accumulation happens).
    @pl.when(c * steps + i < n_blocks)
    def _compute():
        lane = lax.broadcasted_iota(jnp.int32, (1, 128), 1)

        # ---- per-sample (class-group) max: XOR butterfly on the XLU ----------
        # max/compare are exact in the native dtype (bf16 stays bf16).
        xl = x_ref[...]
        m = xl
        d = 1
        while d < group:
            hi = (lane & d) != 0
            m = jnp.maximum(m, _partner(m, d, hi))
            d *= 2

        x = xl.astype(jnp.float32)
        m32 = m.astype(jnp.float32)
        e = jnp.exp(x - m32)                       # in (0, 1]; garbage rows may be NaN

        # ---- per-sample sum of exp -------------------------------------------
        if use_mxu_sum:
            # Segmented sum as a matmul with a block-diagonal {0,1} matrix.
            # Two bf16 passes (value + residual) keep ~f32 accuracy while using
            # only well-defined bf16 MXU arithmetic.  Group sums never cross a
            # row, so garbage in clamped / partial tail rows stays confined.
            row_g = lax.broadcasted_iota(jnp.int32, (128, 128), 0) >> gbits
            col_g = lax.broadcasted_iota(jnp.int32, (128, 128), 1) >> gbits
            bmat = (row_g == col_g).astype(jnp.bfloat16)
            e_hi = e.astype(jnp.bfloat16)
            e_lo = (e - e_hi.astype(jnp.float32)).astype(jnp.bfloat16)
            s_all = (jnp.dot(e_hi, bmat, preferred_element_type=jnp.float32)
                     + jnp.dot(e_lo, bmat, preferred_element_type=jnp.float32))
        else:
            # v5e fallback: same XOR butterfly (3 XLUs, slow f32 MXU there).
            s_all = e
            d = 1
            while d < group:
                hi = (lane & d) != 0
                s_all = s_all + _partner(s_all, d, hi)
                d *= 2

        lse = m32 + jnp.log(s_all)                 # per-sample logsumexp, on every lane

        # ---- expand labels (tr, spr) onto 128 lanes via an exact {0,1} matmul -
        # Exact at any MXU precision: small-integer values, single nonzero term.
        g_row = lax.broadcasted_iota(jnp.int32, (spr, 128), 0)
        g_col = lax.broadcasted_iota(jnp.int32, (spr, 128), 1) >> gbits
        expand = (g_col == g_row).astype(jnp.float32)
        lab_lane = jnp.dot(lab_ref[...].astype(jnp.float32), expand,
                           preferred_element_type=jnp.float32)

        # Exactly one matching lane per *selected* sample; -1 labels (mask==0,
        # sample-tail pad, row-tail pad, clamped blocks) never match, so
        # garbage / NaN logits in partially-read blocks contribute exactly 0
        # (jnp.where is a select, NaN-safe).  NOTE: correctness deliberately
        # relies on rolls / group sums staying within a packed row.
        cls_f = (lane & (group - 1)).astype(jnp.float32)
        onehot = lab_lane == cls_f
        ce = jnp.where(onehot, lse - x, 0.0)

        # Fold rows into a (32, 128) partial: 4 independent vreg add chains.
        out_ref[...] += jnp.sum(ce.reshape(block_rows // 32, 32, 128), axis=0)


@functools.lru_cache(maxsize=1)
def _chip_config():
    kind = ""
    try:
        kind = jax.devices()[0].device_kind.lower()
    except Exception:
        pass
    is_v5e = ("v5e" in kind) or ("v5 lite" in kind) or ("v5litepod" in kind)
    is_v6 = "v6" in kind
    two_cores = any(t in kind for t in ("v7", "v4", "v5p"))
    if is_v5e:
        block_rows, vmem_limit = 1024, 32 * 1024 * 1024
    elif is_v6:
        block_rows, vmem_limit = 4096, 64 * 1024 * 1024
    else:
        block_rows, vmem_limit = 2048, None
    return dict(num_cores=2 if two_cores else 1,
                block_rows=block_rows,
                use_mxu_sum=not is_v5e,
                vmem_limit=vmem_limit)


@functools.partial(jax.jit, static_argnames=("block_rows", "num_cores",
                                             "use_mxu_sum", "vmem_limit"))
def _masked_ce_impl(pred, label, mask, *, block_rows, num_cores, use_mxu_sum,
                    vmem_limit):
    """mean(F.cross_entropy(pred[mask], label[mask])) for pred (..., C).

    Returns NaN when nothing is selected (matches PyTorch mean over an empty
    selection).  The mask is binarized (PyTorch .bool() semantics).
    """
    C = pred.shape[-1]
    M = math.prod(pred.shape[:-1])
    pred = pred.reshape(M, C)
    label = label.reshape(M)
    mask = mask.reshape(M)

    # Denominator computed outside the kernel (kernel only sums the numerator).
    den = jnp.sum((mask != 0).astype(jnp.float32))

    # class-group width: smallest power of two >= C (so it divides 128)
    group = 1 << (C - 1).bit_length()
    if group > 128:
        raise ValueError("more than 128 classes not supported")
    spr = 128 // group                              # packed samples per 128-lane row

    if group != C:
        # TODO(synk): non-power-of-two class counts force a one-off class-pad
        # copy of the logits (full HBM read+write) before the kernel.
        pred = jnp.pad(pred, ((0, 0), (0, group - C)), constant_values=-1e30)

    # Fold the boolean selection mask into the labels (-1 == not selected).
    # NOTE: a selected label >= C is invalid input (PyTorch would raise); here
    # it silently contributes 0 to the numerator.
    lab = jnp.where(mask != 0, label.astype(jnp.int32), jnp.int32(-1))

    m_pad = (-M) % spr
    if m_pad:
        # TODO(synk): when M*C is not a multiple of 128 the row-major
        # (rows, 128) view does not exist, so a one-off logits pad copy is
        # unavoidable with this layout; prefer shapes with M % (128//group)==0.
        pred = jnp.pad(pred, ((0, m_pad), (0, 0)))
        lab = jnp.pad(lab, ((0, m_pad),), constant_values=-1)

    rows = (M + m_pad) // spr
    x2d = pred.reshape(rows, 128)                   # free row-major relabeling only

    tr = min(block_rows, ((rows + 31) // 32) * 32)  # packed rows per block, %32 == 0
    n_blocks = pl.cdiv(rows, tr)
    steps = pl.cdiv(n_blocks, num_cores)
    last_block = n_blocks - 1

    # Labels are tiny: pad them so every in-range block reads well-defined data
    # (-1 == ignore).  The logits' last block is allowed to read past the end
    # of x2d (Pallas clamps the DMA; the stale tail is ignored via -1 labels).
    lab2d = lab.reshape(rows, spr)
    if n_blocks * tr != rows:
        lab2d = jnp.pad(lab2d, ((0, n_blocks * tr - rows), (0, 0)),
                        constant_values=-1)

    kernel = functools.partial(_masked_ce_kernel, group=group, block_rows=tr,
                               n_blocks=n_blocks, steps=steps,
                               use_mxu_sum=use_mxu_sum)

    def blk_idx(c, i):
        return (jnp.minimum(c * steps + i, last_block), 0)

    lab_spec = pl.BlockSpec((tr, spr), blk_idx)
    x_spec = pl.BlockSpec((tr, 128), blk_idx)
    out_spec = pl.BlockSpec((None, 32, 128), lambda c, i: (c, 0, 0))

    # TODO(synk): label stream kept int32 / (tr, spr)-shaped for robustness;
    # int8 + lane-dense packing would further shrink label DMA / VMEM.
    mm_flops = (4 if use_mxu_sum else 1) * 2 * 128  # per logits element (advisory)
    cost = pl.CostEstimate(
        flops=(mm_flops + 32) * x2d.size,
        transcendentals=2 * x2d.size,
        bytes_accessed=(x2d.size * x2d.dtype.itemsize + lab2d.size * 4
                        + num_cores * 32 * 128 * 4))

    partial_sums = pl.pallas_call(
        kernel,
        out_shape=jax.ShapeDtypeStruct((num_cores, 32, 128), jnp.float32),
        grid_spec=pltpu.PrefetchScalarGridSpec(
            num_scalar_prefetch=0,
            grid=(num_cores, steps),
            in_specs=[lab_spec, x_spec],
            out_specs=out_spec,
        ),
        compiler_params=pltpu.CompilerParams(
            dimension_semantics=("parallel", "arbitrary"),
            vmem_limit_bytes=vmem_limit),
        cost_estimate=cost,
    )(lab2d, x2d)

    num = jnp.sum(partial_sums)
    # reduction='mean' over selected rows -> no EPS (PyTorch semantics).
    return num / den


def masked_cross_entropy(pred, label, mask):
    cfg = _chip_config()
    return _masked_ce_impl(pred, label, mask,
                           block_rows=cfg["block_rows"],
                           num_cores=cfg["num_cores"],
                           use_mxu_sum=cfg["use_mxu_sum"],
                           vmem_limit=cfg["vmem_limit"])


class PPLLossFunction:
    """JAX/Pallas re-implementation of ScafVAE.model.loss.PPLLossFunction."""

    def __init__(self):
        self.dic_loss = {}
        self.dic_log = {}
        self.loss_weight = dict(LOSS_WEIGHT)

    def get_loss_weight(self, k, epoch=-1):
        w = self.loss_weight[k]
        if isinstance(w, (list, tuple)):
            if epoch >= len(w) or epoch == -1:
                return w[-1]
            return w[epoch]
        return w

    def get_single_bond_loss(self, dic_data):
        mask = dic_data['mask_for_edge_single_masked']      # (B, N)
        pred = dic_data['l_edge_single_masked_pred']        # (B, N, C)
        label = dic_data['l_edge_label']                    # (B, N)
        self.dic_loss['l_single_bond_loss'] = masked_cross_entropy(pred, label, mask)

    def forward(self, dic_data, epoch=1000):
        self.get_single_bond_loss(dic_data)
        grad_loss = 0.0
        for k in self.dic_loss.keys():
            grad_loss = grad_loss + self.dic_loss[k] * self.get_loss_weight(k, epoch=epoch)
        # keep device scalars in the log (no .item()/float() host sync on the hot path)
        self.dic_log.update(dict(self.dic_loss))
        return grad_loss, dict(self.dic_log)

    __call__ = forward


if __name__ == "__main__":
    key = jax.random.PRNGKey(0)
    B, N, C = 2, 128, 8  # batch, edges, bond classes
    k1, k2, k3 = jax.random.split(key, 3)

    pred = jax.random.normal(k1, (B, N, C), dtype=jnp.float32) * 3.0
    label = jax.random.randint(k2, (B, N), 0, C, dtype=jnp.int32)
    mask = (jax.random.uniform(k3, (B, N)) > 0.5).astype(jnp.float32)
    mask = mask.at[0, 0].set(1.0)  # guarantee at least one selected element

    dic_data = {
        'mask_for_edge_single_masked': mask,
        'l_edge_single_masked_pred': pred,
        'l_edge_label': label,
    }

    loss_fn = PPLLossFunction()
    grad_loss, dic_log = loss_fn(dic_data, epoch=1000)
    grad_loss = jax.block_until_ready(grad_loss)

    # pure-JAX reference (masked-select + mean cross entropy)
    pred2 = pred.reshape(-1, C)
    label1 = label.reshape(-1)
    mask1 = mask.reshape(-1)
    logp = jax.nn.log_softmax(pred2, axis=-1)
    ce = -jnp.take_along_axis(logp, label1[:, None], axis=-1)[:, 0]
    ref = jnp.sum(ce * mask1) / jnp.sum(mask1)

    # Tolerance 1e-4: the two-pass bf16 MXU group-sum is bounded to ~1.5e-5
    # relative error (typically ~1e-6), independent of MXU f32 behaviour.
    assert jnp.allclose(grad_loss, ref, atol=1e-4, rtol=1e-4), (grad_loss, ref)
    assert 'l_single_bond_loss' in dic_log
    print("KERNEL_OK")
</pallas_src>

<mosaic_0001>
module attributes {stable_mosaic.version = 11 : i64} {
  func.func @_masked_ce_kernel(%arg0: i32, %arg1: i32, %arg2: memref<32x16xi32, #tpu.memory_space<vmem>>, %arg3: memref<32x128xf32, #tpu.memory_space<vmem>>, %arg4: memref<1x32x128xf32, #tpu.memory_space<vmem>>) attributes {dimension_semantics = [#tpu.dimension_semantics<parallel>, #tpu.dimension_semantics<arbitrary>], iteration_bounds = array<i64: 1, 1>, scalar_prefetch = 0 : i64, scratch_operands = 0 : i64, tpu.core_type = #tpu.core_type<tc>, window_params = [{transform_indices = @transform_0, window_bounds = array<i64: 32, 16>}, {transform_indices = @transform_1, window_bounds = array<i64: 32, 128>}, {transform_indices = @transform_2, window_bounds = array<i64: 1, 32, 128>}]} {
    %c0_i32 = arith.constant 0 : i32
    %0 = arith.cmpi eq, %arg1, %c0_i32 : i32
    %1 = arith.extui %0 : i1 to i32
    %c0_i32_0 = arith.constant 0 : i32
    %2 = arith.cmpi ne, %1, %c0_i32_0 : i32
    scf.if %2 {
      %cst = arith.constant 0.000000e+00 : f32
      %8 = vector.broadcast %cst : f32 to vector<32x128xf32>
      %c0 = arith.constant 0 : index
      %c0_3 = arith.constant 0 : index
      %c0_4 = arith.constant 0 : index
      %9 = vector.load %arg4[%c0, %c0_3, %c0_4] : memref<1x32x128xf32, #tpu.memory_space<vmem>>, vector<1x32x128xf32>
      %10 = vector.shape_cast %9 : vector<1x32x128xf32> to vector<32x128xf32>
      %11 = vector.shape_cast %8 : vector<32x128xf32> to vector<1x32x128xf32>
      tpu.vector_store %arg4[%c0, %c0_3, %c0_4], %11 {strides = array<i32>} : memref<1x32x128xf32, #tpu.memory_space<vmem>>, vector<1x32x128xf32>,
    } else {
    }
    %c1_i32 = arith.constant 1 : i32
    %3 = arith.muli %arg0, %c1_i32 : i32
    %4 = arith.addi %3, %arg1 : i32
    %c1_i32_1 = arith.constant 1 : i32
    %5 = arith.cmpi slt, %4, %c1_i32_1 : i32
    %6 = arith.extui %5 : i1 to i32
    %c0_i32_2 = arith.constant 0 : i32
    %7 = arith.cmpi ne, %6, %c0_i32_2 : i32
    scf.if %7 {
      %8 = tpu.iota {dimensions = array<i32: 1>} : vector<1x128xi32>
      %c0 = arith.constant 0 : index
      %c0_3 = arith.constant 0 : index
      %9 = vector.load %arg3[%c0, %c0_3] : memref<32x128xf32, #tpu.memory_space<vmem>>, vector<32x128xf32>
      %c1_i32_4 = arith.constant 1 : i32
      %10 = vector.broadcast %c1_i32_4 : i32 to vector<1x128xi32>
      %11 = arith.andi %8, %10 : vector<1x128xi32>
      %c0_i32_5 = arith.constant 0 : i32
      %12 = vector.broadcast %c0_i32_5 : i32 to vector<1x128xi32>
      %13 = arith.cmpi ne, %11, %12 : vector<1x128xi32>
      %c1_i32_6 = arith.constant 1 : i32
      %14 = tpu.dynamic_rotate %9 by %c1_i32_6 dim 1 : vector<32x128xf32>, i32 -> vector<32x128xf32>
      %c127_i32 = arith.constant 127 : i32
      %15 = tpu.dynamic_rotate %9 by %c127_i32 dim 1 : vector<32x128xf32>, i32 -> vector<32x128xf32>
      %16 = vector.shape_cast %13 : vector<1x128xi1> to vector<1x128xi1>
      %17 = vector.broadcast %16 : vector<1x128xi1> to vector<32x128xi1>
      %18 = arith.select %17, %14, %15 : vector<32x128xi1>, vector<32x128xf32>
      %19 = arith.maximumf %9, %18 : vector<32x128xf32>
      %c2_i32 = arith.constant 2 : i32
      %20 = vector.broadcast %c2_i32 : i32 to vector<1x128xi32>
      %21 = arith.andi %8, %20 : vector<1x128xi32>
      %c0_i32_7 = arith.constant 0 : i32
      %22 = vector.broadcast %c0_i32_7 : i32 to vector<1x128xi32>
      %23 = arith.cmpi ne, %21, %22 : vector<1x128xi32>
      %c2_i32_8 = arith.constant 2 : i32
      %24 = tpu.dynamic_rotate %19 by %c2_i32_8 dim 1 : vector<32x128xf32>, i32 -> vector<32x128xf32>
      %c126_i32 = arith.constant 126 : i32
      %25 = tpu.dynamic_rotate %19 by %c126_i32 dim 1 : vector<32x128xf32>, i32 -> vector<32x128xf32>
      %26 = vector.shape_cast %23 : vector<1x128xi1> to vector<1x128xi1>
      %27 = vector.broadcast %26 : vector<1x128xi1> to vector<32x128xi1>
      %28 = arith.select %27, %24, %25 : vector<32x128xi1>, vector<32x128xf32>
      %29 = arith.maximumf %19, %28 : vector<32x128xf32>
      %c4_i32 = arith.constant 4 : i32
      %30 = vector.broadcast %c4_i32 : i32 to vector<1x128xi32>
      %31 = arith.andi %8, %30 : vector<1x128xi32>
      %c0_i32_9 = arith.constant 0 : i32
      %32 = vector.broadcast %c0_i32_9 : i32 to vector<1x128xi32>
      %33 = arith.cmpi ne, %31, %32 : vector<1x128xi32>
      %c4_i32_10 = arith.constant 4 : i32
      %34 = tpu.dynamic_rotate %29 by %c4_i32_10 dim 1 : vector<32x128xf32>, i32 -> vector<32x128xf32>
      %c124_i32 = arith.constant 124 : i32
      %35 = tpu.dynamic_rotate %29 by %c124_i32 dim 1 : vector<32x128xf32>, i32 -> vector<32x128xf32>
      %36 = vector.shape_cast %33 : vector<1x128xi1> to vector<1x128xi1>
      %37 = vector.broadcast %36 : vector<1x128xi1> to vector<32x128xi1>
      %38 = arith.select %37, %34, %35 : vector<32x128xi1>, vector<32x128xf32>
      %39 = arith.maximumf %29, %38 : vector<32x128xf32>
      %40 = arith.subf %9, %39 : vector<32x128xf32>
      %41 = math.exp %40 : vector<32x128xf32>
      %42 = tpu.iota {dimensions = array<i32: 0>} : vector<128x128xi32>
      %c3_i32 = arith.constant 3 : i32
      %43 = vector.broadcast %c3_i32 : i32 to vector<128x128xi32>
      %44 = arith.shrsi %42, %43 : vector<128x128xi32>
      %45 = tpu.iota {dimensions = array<i32: 1>} : vector<128x128xi32>
      %c3_i32_11 = arith.constant 3 : i32
      %46 = vector.broadcast %c3_i32_11 : i32 to vector<128x128xi32>
      %47 = arith.shrsi %45, %46 : vector<128x128xi32>
      %48 = arith.cmpi eq, %44, %47 : vector<128x128xi32>
      %49 = arith.extui %48 : vector<128x128xi1> to vector<128x128xi32>
      %50 = arith.sitofp %49 : vector<128x128xi32> to vector<128x128xf32>
      %51 = arith.truncf %50 : vector<128x128xf32> to vector<128x128xbf16>
      %52 = arith.truncf %41 : vector<32x128xf32> to vector<32x128xbf16>
      %53 = arith.extf %52 : vector<32x128xbf16> to vector<32x128xf32>
      %54 = arith.subf %41, %53 : vector<32x128xf32>
      %55 = arith.truncf %54 : vector<32x128xf32> to vector<32x128xbf16>
      %cst = arith.constant dense<0.000000e+00> : vector<32x128xf32>
      %56 = tpu.matmul %52, %51, %cst {dimension_numbers = #tpu.dot_dimension_numbers<[1], [0], [0], [1], [0, 0, 1, 1], [], []>} : vector<32x128xbf16>, vector<128x128xbf16>, vector<32x128xf32> -> vector<32x128xf32>
      %cst_12 = arith.constant dense<0.000000e+00> : vector<32x128xf32>
      %57 = tpu.matmul %55, %51, %cst_12 {dimension_numbers = #tpu.dot_dimension_numbers<[1], [0], [0], [1], [0, 0, 1, 1], [], []>} : vector<32x128xbf16>, vector<128x128xbf16>, vector<32x128xf32> -> vector<32x128xf32>
      %58 = arith.addf %56, %57 : vector<32x128xf32>
      %59 = math.log %58 : vector<32x128xf32>
      %60 = arith.addf %39, %59 : vector<32x128xf32>
      %61 = tpu.iota {dimensions = array<i32: 0>} : vector<16x128xi32>
      %62 = tpu.iota {dimensions = array<i32: 1>} : vector<16x128xi32>
      %c3_i32_13 = arith.constant 3 : i32
      %63 = vector.broadcast %c3_i32_13 : i32 to vector<16x128xi32>
      %64 = arith.shrsi %62, %63 : vector<16x128xi32>
      %65 = arith.cmpi eq, %64, %61 : vector<16x128xi32>
      %66 = arith.extui %65 : vector<16x128xi1> to vector<16x128xi32>
      %67 = arith.sitofp %66 : vector<16x128xi32> to vector<16x128xf32>
      %c0_14 = arith.constant 0 : index
      %c0_15 = arith.constant 0 : index
      %68 = vector.load %arg2[%c0_14, %c0_15] : memref<32x16xi32, #tpu.memory_space<vmem>>, vector<32x16xi32>
      %69 = arith.sitofp %68 : vector<32x16xi32> to vector<32x16xf32>
      %cst_16 = arith.constant dense<0.000000e+00> : vector<32x128xf32>
      %70 = tpu.matmul %69, %67, %cst_16 {dimension_numbers = #tpu.dot_dimension_numbers<[1], [0], [0], [1], [0, 0, 1, 1], [], []>} : vector<32x16xf32>, vector<16x128xf32>, vector<32x128xf32> -> vector<32x128xf32>
      %c7_i32 = arith.constant 7 : i32
      %71 = vector.broadcast %c7_i32 : i32 to vector<1x128xi32>
      %72 = arith.andi %8, %71 : vector<1x128xi32>
      %73 = arith.sitofp %72 : vector<1x128xi32> to vector<1x128xf32>
      %74 = vector.broadcast %73 : vector<1x128xf32> to vector<32x128xf32>
      %75 = arith.cmpf oeq, %70, %74 : vector<32x128xf32>
      %76 = arith.subf %60, %9 : vector<32x128xf32>
      %cst_17 = arith.constant 0.000000e+00 : f32
      %77 = vector.broadcast %cst_17 : f32 to vector<32x128xf32>
      %78 = arith.select %75, %76, %77 : vector<32x128xi1>, vector<32x128xf32>
      %c0_18 = arith.constant 0 : index
      %c0_19 = arith.constant 0 : index
      %c0_20 = arith.constant 0 : index
      %79 = vector.load %arg4[%c0_18, %c0_19, %c0_20] : memref<1x32x128xf32, #tpu.memory_space<vmem>>, vector<1x32x128xf32>
      %80 = vector.shape_cast %79 : vector<1x32x128xf32> to vector<32x128xf32>
      %81 = vector.shape_cast %78 : vector<32x128xf32> to vector<1x32x128xf32>
      %cst_21 = arith.constant dense<0.000000e+00> : vector<32x128xf32>
      %82 = vector.multi_reduction <add>, %81, %cst_21 [0] : vector<1x32x128xf32> to vector<32x128xf32>
      %83 = arith.addf %80, %82 : vector<32x128xf32>
      %c0_22 = arith.constant 0 : index
      %c0_23 = arith.constant 0 : index
      %c0_24 = arith.constant 0 : index
      %84 = vector.load %arg4[%c0_22, %c0_23, %c0_24] : memref<1x32x128xf32, #tpu.memory_space<vmem>>, vector<1x32x128xf32>
      %85 = vector.shape_cast %84 : vector<1x32x128xf32> to vector<32x128xf32>
      %86 = vector.shape_cast %83 : vector<32x128xf32> to vector<1x32x128xf32>
      tpu.vector_store %arg4[%c0_22, %c0_23, %c0_24], %86 {strides = array<i32>} : memref<1x32x128xf32, #tpu.memory_space<vmem>>, vector<1x32x128xf32>,
    } else {
    }
    return
  }
  func.func @transform_0(%arg0: i32, %arg1: i32) -> (i32, i32) {
    %c1_i32 = arith.constant 1 : i32
    %0 = arith.muli %arg0, %c1_i32 : i32
    %1 = arith.addi %0, %arg1 : i32
    %c0_i32 = arith.constant 0 : i32
    %2 = arith.minsi %1, %c0_i32 : i32
    %c0_i32_0 = arith.constant 0 : i32
    %c0_i32_1 = arith.constant 0 : i32
    return %2, %c0_i32_0 : i32, i32
  }
  func.func @transform_1(%arg0: i32, %arg1: i32) -> (i32, i32) {
    %c1_i32 = arith.constant 1 : i32
    %0 = arith.muli %arg0, %c1_i32 : i32
    %1 = arith.addi %0, %arg1 : i32
    %c0_i32 = arith.constant 0 : i32
    %2 = arith.minsi %1, %c0_i32 : i32
    %c0_i32_0 = arith.constant 0 : i32
    %c0_i32_1 = arith.constant 0 : i32
    return %2, %c0_i32_0 : i32, i32
  }
  func.func @transform_2(%arg0: i32, %arg1: i32) -> (i32, i32, i32) {
    %c0_i32 = arith.constant 0 : i32
    %c0_i32_0 = arith.constant 0 : i32
    %c0_i32_1 = arith.constant 0 : i32
    return %arg0, %c0_i32, %c0_i32_0 : i32, i32, i32
  }
}

</mosaic_0001>

<llo_original>
// kernel: _masked_ce_impl.1
$region0: #{_masked_ce_impl.1}
  #allocation0 [shape = 'u32[]', space=smem, size = 0x4, offset = 0x4, fixed_abs, tag = 'smem constant byte address 0x4 - core index']
  #allocation1 [shape = 'u32[72,128]{1,0:T(1,128)}', space=vmem, size = 0x9000, scoped, tag = 'internal scratch']
  %s0 = inlined_call_operand.vmem [shape: s32[32,16], index: 0, kind: input, shape index: {}]
  %s1 = inlined_call_operand.vmem [shape: f32[16,128], index: 1, kind: input, shape index: {}]
  %s2 = inlined_call_operand.vmem [shape: f32[1,32,128], index: 2, kind: output, shape index: {}]
  %s3 = sld [smem:[#allocation0]]
  $region26: #{_masked_ce_impl.1} parent=0
    _
  %s5 = ssub.s32 1, %s3
  %s6 = scalar_select 0, %s5, %s3
  // Predicated region
  $region2: #{_masked_ce_impl.1} parent=0 // pred_check
    _
  $region3: #{_masked_ce_impl.1} parent=0 // pred_check_branch
    %8 = sbr.rel (0) target = $region5
  $region4: #{_masked_ce_impl.1} parent=0 // pred_region
    %s9 = sadd.s32 0, 0
    %p10 = scmp.lt.s32.totalorder %s9, 0
    %s11 = scalar_select %p10, %s9, 0
    %s12 = smul.u32 4, %s11
    %p13 = scmp.lt.s32.totalorder %s12, 3
    %s14 = scalar_select %p13, %s12, 3
    %s15 = smul.addr %s14, 8
    %s16 = scalar_lea.vmem %s0, %s15
    %s17 = sadd.s32 0, 0
    %p18 = scmp.lt.s32.totalorder %s17, 0
    %s19 = scalar_select %p18, %s17, 0
    %s20 = smul.u32 4, %s19
  $region5: #{_masked_ce_impl.1} parent=0 // pred_fallthru
    _
  // Predicated region
  $region6: #{_masked_ce_impl.1} parent=0 // pred_check
    _
  $region7: #{_masked_ce_impl.1} parent=0 // pred_check_branch
    %22 = sbr.rel (0) target = $region9
  $region8: #{_masked_ce_impl.1} parent=0 // pred_region
    %s23 = sadd.s32 0, 0
    %p24 = scmp.lt.s32.totalorder %s23, 0
    %s25 = scalar_select %p24, %s23, 0
    %s26 = smul.u32 4, %s25
    %s27 = ssub.s32 2, %s26
    %s28 = smul.u32 8, %s27
    %p29 = scmp.lt.s32.totalorder %s26, 1
    %s30 = scalar_select %p29, %s26, 1
    %s31 = smul.addr %s30, 8
    %s32 = scalar_lea.vmem %s1, %s31
    %s33 = sadd.s32 0, 0
    %p34 = scmp.lt.s32.totalorder %s33, 0
    %s35 = scalar_select %p34, %s33, 0
    %s36 = smul.u32 4, %s35
    %s37 = ssub.s32 2, %s36
    %s38 = smul.u32 8, %s37
  $region9: #{_masked_ce_impl.1} parent=0 // pred_fallthru
    _
  %s39 = sadd.s32 0, 0
  %p40 = scmp.lt.s32.totalorder %s39, 0
  %s41 = scalar_select %p40, %s39, 0
  %s42 = smul.u32 4, %s41
  %p43 = scmp.lt.s32.totalorder %s42, 3
  %s44 = scalar_select %p43, %s42, 3
  %s45 = smul.addr %s44, 8
  %s46 = scalar_lea.vmem %s0, %s45
  %s47 = sadd.s32 0, 0
  %p48 = scmp.lt.s32.totalorder %s47, 0
  %s49 = scalar_select %p48, %s47, 0
  %s50 = smul.u32 4, %s49
  %s51 = ssub.s32 2, %s50
  %s52 = smul.u32 8, %s51
  %p53 = scmp.lt.s32.totalorder %s50, 1
  %s54 = scalar_select %p53, %s50, 1
  %s55 = smul.addr %s54, 8
  %s56 = scalar_lea.vmem %s1, %s55
  %s57 = sadd.s32 0, 0
  %p58 = scmp.lt.s32.totalorder %s57, 0
  %s59 = scalar_select %p58, %s57, 0
  %s60 = smul.u32 4, %s59
  %p61 = scmp.lt.s32.totalorder %s60, 3
  %s62 = scalar_select %p61, %s60, 3
  %s63 = smul.addr %s62, 8
  %s64 = scalar_lea.vmem %s0, %s63
  %s65 = sadd.s32 0, 0
  %p66 = scmp.lt.s32.totalorder %s65, 0
  %s67 = scalar_select %p66, %s65, 0
  %s68 = smul.u32 4, %s67
  %s69 = sadd.s32 0, 0
  %p70 = scmp.lt.s32.totalorder %s69, 0
  %s71 = scalar_select %p70, %s69, 0
  %s72 = smul.u32 4, %s71
  %s73 = ssub.s32 2, %s72
  %s74 = smul.u32 8, %s73
  %p75 = scmp.lt.s32.totalorder %s72, 1
  %s76 = scalar_select %p75, %s72, 1
  %s77 = smul.addr %s76, 8
  %s78 = scalar_lea.vmem %s1, %s77
  %s79 = sadd.s32 0, 0
  %p80 = scmp.lt.s32.totalorder %s79, 0
  %s81 = scalar_select %p80, %s79, 0
  %s82 = smul.u32 4, %s81
  %s83 = ssub.s32 2, %s82
  %s84 = smul.u32 8, %s83
  %p85 = scmp.eq.s32.totalorder 0, 0
  // Predicated region
  $region10: #{_masked_ce_impl.1} parent=0 // pred_check
    %p86 = pneg %p85
  $region11: #{_masked_ce_impl.1} parent=0 // pred_check_branch
    %88 = sbr.rel (%p86) target = $region13
  $region12: #{_masked_ce_impl.1} parent=0 // pred_region
    %89 = vst [vmem:[%s2] sm:$0xff] 0.0
    %90 = vst [vmem:[%s2 + $0x8] sm:$0xff] 0.0
    %91 = vst [vmem:[%s2 + $0x10] sm:$0xff] 0.0
    %92 = vst [vmem:[%s2 + $0x18] sm:$0xff] 0.0
  $region13: #{_masked_ce_impl.1} parent=0 // pred_fallthru
    _
  %s93 = sadd.s32 0, 0
  %p94 = scmp.lt.s32.totalorder %s93, 1
  // Predicated region
  $region14: #{_masked_ce_impl.1} parent=0 // pred_check
    %p95 = pneg %p94
  $region15: #{_masked_ce_impl.1} parent=0 // pred_check_branch
    %97 = sbr.rel (%p95) target = $region17
  $region16: #{_masked_ce_impl.1} parent=0 // pred_region
    %v98 = vlaneseq
    %v99 = vand.u32 %v98, 127
    %v100 = vld [vmem:[%s78] sm:$0xff]
    %v101 = vld [vmem:[%s78 + $0x8] sm:$0xff]
    %v102 = vld [vmem:[%s78 + $0x10] sm:$0xff]
    %v103 = vld [vmem:[%s78 + $0x18] sm:$0xff]
    %v104 = vand.u32 %v99, 1
    %vm105 = vcmp.ne.s32.totalorder %v104, 0
    %106 = vrot.lane.b32.xlu0 %v100, 1
    %v107 = vpop.permute.xlu0 %106
    %108 = vrot.lane.b32.xlu0 %v101, 1
    %v109 = vpop.permute.xlu0 %108
    %110 = vrot.lane.b32.xlu0 %v102, 1
    %v111 = vpop.permute.xlu0 %110
    %112 = vrot.lane.b32.xlu0 %v103, 1
    %v113 = vpop.permute.xlu0 %112
    %114 = vrot.lane.b32.xlu0 %v100, 127
    %v115 = vpop.permute.xlu0 %114
    %116 = vrot.lane.b32.xlu0 %v101, 127
    %v117 = vpop.permute.xlu0 %116
    %118 = vrot.lane.b32.xlu0 %v102, 127
    %v119 = vpop.permute.xlu0 %118
    %120 = vrot.lane.b32.xlu0 %v103, 127
    %v121 = vpop.permute.xlu0 %120
    %v122 = vsel %vm105, 1, 0
    %vm123 = vcmp.eq.s32.totalorder %v122, 1
    %v124 = vsel %vm123, %v107, %v115
    %v125 = vsel %vm123, %v109, %v117
    %v126 = vsel %vm123, %v111, %v119
    %v127 = vsel %vm123, %v113, %v121
    %v128 = vmax.f32 %v100, %v124
    %v129 = vmax.f32 %v101, %v125
    %v130 = vmax.f32 %v102, %v126
    %v131 = vmax.f32 %v103, %v127
    %v132 = vand.u32 %v99, 2
    %vm133 = vcmp.ne.s32.totalorder %v132, 0
    %134 = vrot.lane.b32.xlu0 %v128, 2
    %v135 = vpop.permute.xlu0 %134
    %136 = vrot.lane.b32.xlu0 %v129, 2
    %v137 = vpop.permute.xlu0 %136
    %138 = vrot.lane.b32.xlu0 %v130, 2
    %v139 = vpop.permute.xlu0 %138
    %140 = vrot.lane.b32.xlu0 %v131, 2
    %v141 = vpop.permute.xlu0 %140
    %142 = vrot.lane.b32.xlu0 %v128, 126
    %v143 = vpop.permute.xlu0 %142
    %144 = vrot.lane.b32.xlu0 %v129, 126
    %v145 = vpop.permute.xlu0 %144
    %146 = vrot.lane.b32.xlu0 %v130, 126
    %v147 = vpop.permute.xlu0 %146
    %148 = vrot.lane.b32.xlu0 %v131, 126
    %v149 = vpop.permute.xlu0 %148
    %v150 = vsel %vm133, 1, 0
    %vm151 = vcmp.eq.s32.totalorder %v150, 1
    %v152 = vsel %vm151, %v135, %v143
    %v153 = vsel %vm151, %v137, %v145
    %v154 = vsel %vm151, %v139, %v147
    %v155 = vsel %vm151, %v141, %v149
    %v156 = vmax.f32 %v128, %v152
    %v157 = vmax.f32 %v129, %v153
    %v158 = vmax.f32 %v130, %v154
    %v159 = vmax.f32 %v131, %v155
    %v160 = vand.u32 %v99, 4
    %vm161 = vcmp.ne.s32.totalorder %v160, 0
    %162 = vrot.lane.b32.xlu0 %v156, 4
    %v163 = vpop.permute.xlu0 %162
    %164 = vrot.lane.b32.xlu0 %v157, 4
    %v165 = vpop.permute.xlu0 %164
    %166 = vrot.lane.b32.xlu0 %v158, 4
    %v167 = vpop.permute.xlu0 %166
    %168 = vrot.lane.b32.xlu0 %v159, 4
    %v169 = vpop.permute.xlu0 %168
    %170 = vrot.lane.b32.xlu0 %v156, 124
    %v171 = vpop.permute.xlu0 %170
    %172 = vrot.lane.b32.xlu0 %v157, 124
    %v173 = vpop.permute.xlu0 %172
    %174 = vrot.lane.b32.xlu0 %v158, 124
    %v175 = vpop.permute.xlu0 %174
    %176 = vrot.lane.b32.xlu0 %v159, 124
    %v177 = vpop.permute.xlu0 %176
    %v178 = vsel %vm161, 1, 0
    %vm179 = vcmp.eq.s32.totalorder %v178, 1
    %v180 = vsel %vm179, %v163, %v171
    %v181 = vsel %vm179, %v165, %v173
    %v182 = vsel %vm179, %v167, %v175
    %v183 = vsel %vm179, %v169, %v177
    %v184 = vmax.f32 %v156, %v180
    %v185 = vmax.f32 %v157, %v181
    %v186 = vmax.f32 %v158, %v182
    %v187 = vmax.f32 %v159, %v183
    %v188 = vsub.f32 %v100, %v184
    %v189 = vsub.f32 %v101, %v185
    %v190 = vsub.f32 %v102, %v186
    %v191 = vsub.f32 %v103, %v187
    %v192 = vmul.f32 %v188, 1.442695
    %v193 = vpow.pop %v192
    %v194 = vmul.f32 %v189, 1.442695
    %v195 = vpow.pop %v194
    %v196 = vmul.f32 %v190, 1.442695
    %v197 = vpow.pop %v196
    %v198 = vmul.f32 %v191, 1.442695
    %v199 = vpow.pop %v198
    %v200 = vlaneseq
    %v201 = vshrl.u32 %v200, 7
    %v202 = vadd.s32 %v201, 8
    %v203 = vadd.s32 %v201, 16
    %v204 = vadd.s32 %v201, 24
    %v205 = vadd.s32 %v201, 32
    %v206 = vadd.s32 %v201, 40
    %v207 = vadd.s32 %v201, 48
    %v208 = vadd.s32 %v201, 56
    %v209 = vadd.s32 %v201, 64
    %v210 = vadd.s32 %v201, 72
    %v211 = vadd.s32 %v201, 80
    %v212 = vadd.s32 %v201, 88
    %v213 = vadd.s32 %v201, 96
    %v214 = vadd.s32 %v201, 104
    %v215 = vadd.s32 %v201, 112
    %v216 = vadd.s32 %v201, 120
    %v217 = vshra.s32 %v201, 3
    %v218 = vshra.s32 %v202, 3
    %v219 = vshra.s32 %v203, 3
    %v220 = vshra.s32 %v204, 3
    %v221 = vshra.s32 %v205, 3
    %v222 = vshra.s32 %v206, 3
    %v223 = vshra.s32 %v207, 3
    %v224 = vshra.s32 %v208, 3
    %v225 = vshra.s32 %v209, 3
    %v226 = vshra.s32 %v210, 3
    %v227 = vshra.s32 %v211, 3
    %v228 = vshra.s32 %v212, 3
    %v229 = vshra.s32 %v213, 3
    %v230 = vshra.s32 %v214, 3
    %v231 = vshra.s32 %v215, 3
    %v232 = vshra.s32 %v216, 3
    %v233 = vshra.s32 %v99, 3
    %vm234 = vcmp.eq.s32.totalorder %v217, %v233
    %vm235 = vcmp.eq.s32.totalorder %v218, %v233
    %vm236 = vcmp.eq.s32.totalorder %v219, %v233
    %vm237 = vcmp.eq.s32.totalorder %v220, %v233
    %vm238 = vcmp.eq.s32.totalorder %v221, %v233
    %vm239 = vcmp.eq.s32.totalorder %v222, %v233
    %vm240 = vcmp.eq.s32.totalorder %v223, %v233
    %vm241 = vcmp.eq.s32.totalorder %v224, %v233
    %vm242 = vcmp.eq.s32.totalorder %v225, %v233
    %vm243 = vcmp.eq.s32.totalorder %v226, %v233
    %vm244 = vcmp.eq.s32.totalorder %v227, %v233
    %vm245 = vcmp.eq.s32.totalorder %v228, %v233
    %vm246 = vcmp.eq.s32.totalorder %v229, %v233
    %vm247 = vcmp.eq.s32.totalorder %v230, %v233
    %vm248 = vcmp.eq.s32.totalorder %v231, %v233
    %vm249 = vcmp.eq.s32.totalorder %v232, %v233
    %v250 = vsel %vm234, 1, 0
    %v251 = vsel %vm235, 1, 0
    %v252 = vsel %vm236, 1, 0
    %v253 = vsel %vm237, 1, 0
    %v254 = vsel %vm238, 1, 0
    %v255 = vsel %vm239, 1, 0
    %v256 = vsel %vm240, 1, 0
    %v257 = vsel %vm241, 1, 0
    %v258 = vsel %vm242, 1, 0
    %v259 = vsel %vm243, 1, 0
    %v260 = vsel %vm244, 1, 0
    %v261 = vsel %vm245, 1, 0
    %v262 = vsel %vm246, 1, 0
    %v263 = vsel %vm247, 1, 0
    %v264 = vsel %vm248, 1, 0
    %v265 = vsel %vm249, 1, 0
    %v266 = vcvt.s32.f32 %v250
    %v267 = vcvt.s32.f32 %v251
    %v268 = vcvt.s32.f32 %v252
    %v269 = vcvt.s32.f32 %v253
    %v270 = vcvt.s32.f32 %v254
    %v271 = vcvt.s32.f32 %v255
    %v272 = vcvt.s32.f32 %v256
    %v273 = vcvt.s32.f32 %v257
    %v274 = vcvt.s32.f32 %v258
    %v275 = vcvt.s32.f32 %v259
    %v276 = vcvt.s32.f32 %v260
    %v277 = vcvt.s32.f32 %v261
    %v278 = vcvt.s32.f32 %v262
    %v279 = vcvt.s32.f32 %v263
    %v280 = vcvt.s32.f32 %v264
    %v281 = vcvt.s32.f32 %v265
    %v282 = vpack.c.bf16 %v267, %v266
    %v283 = vpack.c.bf16 %v269, %v268
    %v284 = vpack.c.bf16 %v271, %v270
    %v285 = vpack.c.bf16 %v273, %v272
    %v286 = vpack.c.bf16 %v275, %v274
    %v287 = vpack.c.bf16 %v277, %v276
    %v288 = vpack.c.bf16 %v279, %v278
    %v289 = vpack.c.bf16 %v281, %v280
    %v290 = vpack.c.bf16 %v193, %v193
    %v291 = vpack.c.bf16 %v195, %v195
    %v292 = vpack.c.bf16 %v197, %v197
    %v293 = vpack.c.bf16 %v199, %v199
    %v294 = vunpack.c.l.bf16 %v290
    %v295 = vunpack.c.l.bf16 %v291
    %v296 = vunpack.c.l.bf16 %v292
    %v297 = vunpack.c.l.bf16 %v293
    %v298 = vsub.f32 %v193, %v294
    %v299 = vsub.f32 %v195, %v295
    %v300 = vsub.f32 %v197, %v296
    %v301 = vsub.f32 %v199, %v297
    %v302 = vpack.c.bf16 %v299, %v298
    %v303 = vpack.c.bf16 %v301, %v300
    %304 = vmatpush.bf16.msra.mxu0 %v289
    %305 = vmatpush.bf16.msra.mxu0 %v288
    %306 = vmatpush.bf16.msra.mxu0 %v287
    %307 = vmatpush.bf16.msra.mxu0 %v286
    %308 = vmatpush.bf16.msra.mxu0 %v285
    %309 = vmatpush.bf16.msra.mxu0 %v284
    %310 = vmatpush.bf16.msra.mxu0 %v283
    %311 = vmatpush.bf16.msra.mxu0 %v282
    %312 = vmatmul.bf16.gmra.mxu0 %v302
    %v313 = vpop.f32.mrf.mxu0
    %v314 = vadd.f32 0.0, %v313
    %v315 = vpop.f32.mrf.mxu0
    %v316 = vadd.f32 0.0, %v315
    %317 = vmatmul.bf16.gmra.mxu0 %v303
    %v318 = vpop.f32.mrf.mxu0
    %v319 = vadd.f32 0.0, %v318
    %v320 = vpop.f32.mrf.mxu0
    %v321 = vadd.f32 0.0, %v320
    %322 = vdwg.mxu0
    %v327 = vunpack.c.l.b16 %v290
    %v328 = vunpack.c.l.b16 %v291
    %v329 = vunpack.c.l.b16 %v292
    %v330 = vunpack.c.l.b16 %v293
    %v331 = vpack.c.b16 %v328, %v327
    %v332 = vpack.c.b16 %v330, %v329
    %335 = vmatpush.bf16.msra.mxu0 %v289
    %336 = vmatpush.bf16.msra.mxu0 %v288
    %337 = vmatpush.bf16.msra.mxu0 %v287
    %338 = vmatpush.bf16.msra.mxu0 %v286
    %339 = vmatpush.bf16.msra.mxu0 %v285
    %340 = vmatpush.bf16.msra.mxu0 %v284
    %341 = vmatpush.bf16.msra.mxu0 %v283
    %342 = vmatpush.bf16.msra.mxu0 %v282
    %343 = vmatmul.bf16.gmra.mxu0 %v331
    %v344 = vpop.f32.mrf.mxu0
    %v345 = vadd.f32 %v314, %v344
    %v346 = vpop.f32.mrf.mxu0
    %v347 = vadd.f32 %v316, %v346
    %348 = vmatmul.bf16.gmra.mxu0 %v332
    %v349 = vpop.f32.mrf.mxu0
    %v350 = vadd.f32 %v319, %v349
    %v351 = vpop.f32.mrf.mxu0
    %v352 = vadd.f32 %v321, %v351
    %353 = vdwg.mxu0
    %v354 = vlog2.pop %v345
    %v355 = vmul.f32 %v354, 0.6931472
    %v356 = vlog2.pop %v347
    %v357 = vmul.f32 %v356, 0.6931472
    %v358 = vlog2.pop %v350
    %v359 = vmul.f32 %v358, 0.6931472
    %v360 = vlog2.pop %v352
    %v361 = vmul.f32 %v360, 0.6931472
    %v362 = vadd.f32 %v184, %v355
    %v363 = vadd.f32 %v185, %v357
    %v364 = vadd.f32 %v186, %v359
    %v365 = vadd.f32 %v187, %v361
    %vm366 = vcmp.eq.s32.totalorder %v233, %v201
    %vm367 = vcmp.eq.s32.totalorder %v233, %v202
    %v368 = vsel %vm366, 1, 0
    %v369 = vsel %vm367, 1, 0
    %v370 = vcvt.s32.f32 %v368
    %v371 = vcvt.s32.f32 %v369
    %v372 = vld [vmem:[%s64] sm:$0xff]
    %v373 = vld [vmem:[%s64 + $0x8] sm:$0xff]
    %v374 = vld [vmem:[%s64 + $0x10] sm:$0xff]
    %v375 = vld [vmem:[%s64 + $0x18] sm:$0xff]
    %v376 = vcvt.s32.f32 %v372
    %v377 = vcvt.s32.f32 %v373
    %v378 = vcvt.s32.f32 %v374
    %v379 = vcvt.s32.f32 %v375
    %vm380 = vcmask 130048
    %v382 = vsel %vm380, %v376, 0
    %v385 = vsel %vm380, %v377, 0
    %v388 = vsel %vm380, %v378, 0
    %v391 = vsel %vm380, %v379, 0
    %393 = vmatpush.msra.mxu0 0.0
    %394 = vmatpush.msra.mxu0 0.0
    %395 = vmatpush.msra.mxu0 0.0
    %396 = vmatpush.msra.mxu0 0.0
    %397 = vmatpush.msra.mxu0 0.0
    %398 = vmatpush.msra.mxu0 0.0
    %399 = vmatpush.msra.mxu0 0.0
    %400 = vmatpush.msra.mxu0 0.0
    %401 = vmatpush.msra.mxu0 0.0
    %402 = vmatpush.msra.mxu0 0.0
    %403 = vmatpush.msra.mxu0 0.0
    %404 = vmatpush.msra.mxu0 0.0
    %405 = vmatpush.msra.mxu0 0.0
    %406 = vmatpush.msra.mxu0 0.0
    %407 = vmatpush.msra.mxu0 %v371
    %408 = vmatpush.msra.mxu0 %v370
    %409 = vmatmul.f32.gmra.mxu0 %v382
    %v410 = vpop.f32.mrf.mxu0
    %v411 = vadd.f32 0.0, %v410
    %412 = vmatmul.f32.gmra.mxu0 %v385
    %v413 = vpop.f32.mrf.mxu0
    %v414 = vadd.f32 0.0, %v413
    %415 = vmatmul.f32.gmra.mxu0 %v388
    %v416 = vpop.f32.mrf.mxu0
    %v417 = vadd.f32 0.0, %v416
    %418 = vmatmul.f32.gmra.mxu0 %v391
    %v419 = vpop.f32.mrf.mxu0
    %v420 = vadd.f32 0.0, %v419
    %421 = vdwg.mxu0
    %v422 = vand.u32 %v99, 7
    %v423 = vcvt.s32.f32 %v422
    %vm424 = vcmp.eq.f32.partialorder %v411, %v423
    %vm425 = vcmp.eq.f32.partialorder %v414, %v423
    %vm426 = vcmp.eq.f32.partialorder %v417, %v423
    %vm427 = vcmp.eq.f32.partialorder %v420, %v423
    %v428 = vsub.f32 %v362, %v100
    %v429 = vsub.f32 %v363, %v101
    %v430 = vsub.f32 %v364, %v102
    %v431 = vsub.f32 %v365, %v103
    %v432 = vsel %vm424, %v428, 0.0
    %v433 = vsel %vm425, %v429, 0.0
    %v434 = vsel %vm426, %v430, 0.0
    %v435 = vsel %vm427, %v431, 0.0
    %v436 = vld [vmem:[%s2] sm:$0xff]
    %v437 = vld [vmem:[%s2 + $0x8] sm:$0xff]
    %v438 = vld [vmem:[%s2 + $0x10] sm:$0xff]
    %v439 = vld [vmem:[%s2 + $0x18] sm:$0xff]
    %v440 = vadd.f32 %v432, 0.0
    %v441 = vadd.f32 %v433, 0.0
    %v442 = vadd.f32 %v434, 0.0
    %v443 = vadd.f32 %v435, 0.0
    %v444 = vadd.f32 %v436, %v440
    %v445 = vadd.f32 %v437, %v441
    %v446 = vadd.f32 %v438, %v442
    %v447 = vadd.f32 %v439, %v443
    %448 = vst [vmem:[%s2] sm:$0xff] %v444
    %449 = vst [vmem:[%s2 + $0x8] sm:$0xff] %v445
    %450 = vst [vmem:[%s2 + $0x10] sm:$0xff] %v446
    %451 = vst [vmem:[%s2 + $0x18] sm:$0xff] %v447
  $region17: #{_masked_ce_impl.1} parent=0 // pred_fallthru
    _
  // Predicated region
  $region18: #{_masked_ce_impl.1} parent=0 // pred_check
    _
  $region19: #{_masked_ce_impl.1} parent=0 // pred_check_branch
    %453 = sbr.rel (0) target = $region21
  $region20: #{_masked_ce_impl.1} parent=0 // pred_region
    _
  $region21: #{_masked_ce_impl.1} parent=0 // pred_fallthru
    _
  // Predicated region
  $region22: #{_masked_ce_impl.1} parent=0 // pred_check
    _
  $region23: #{_masked_ce_impl.1} parent=0 // pred_check_branch
    %455 = sbr.rel (0) target = $region25
  $region24: #{_masked_ce_impl.1} parent=0 // pred_region
    _
  $region25: #{_masked_ce_impl.1} parent=0 // pred_fallthru
    _

</llo_original>
